<compile_context>
chip_gen: v7x
topology: tpu7x:2x2x1
jax: 0.10.0
libtpu: 0.0.40
codegen_flags: <defaults>
</compile_context>

<pallas_src>
import jax
import jax.numpy as jnp
from jax import lax
from jax.experimental import pallas as pl
from jax.experimental.pallas import tpu as pltpu


def rnn_kernel(x_ref, wxT_ref, whT_ref, bh_ref, wo_ref, bo_ref,
               out_ref, hid_ref, u_ref):
    """
    x_ref   : (seq * batch_p, in_size)  time-major rows (row = t*batch_p + b)
    wxT_ref : (in_size, hidden)         pre-transposed input weight
    whT_ref : (hidden, hidden)          pre-transposed recurrent weight
    bh_ref  : (1, hidden)               i2h bias
    wo_ref  : (1, hidden)               h2o weight row
    bo_ref  : (1, 1)   SMEM             h2o bias (scalar)
    out_ref : (batch_p, 1)
    hid_ref : (batch_p, hidden)
    u_ref   : (seq * batch_p, hidden)   VMEM scratch for the hoisted projection
    """
    seq_batch, _ = x_ref.shape
    batch_p, hidden = hid_ref.shape
    seq = seq_batch // batch_p

    # Phase 1 (hoisted): input projection + bias for all timesteps in a single
    # MXU matmul.  The serial recurrence below only needs h @ Wh^T per step.
    u_ref[...] = (
        jnp.dot(x_ref[...], wxT_ref[...], preferred_element_type=jnp.float32)
        + bh_ref[...])

    # Phase 2: serial linear recurrence; h carried as a fori_loop value
    # (registers), no per-step VMEM round trip of the hidden state.
    whT = whT_ref[...]

    def step(t, h):
        row = pl.multiple_of(t * batch_p, batch_p)       # sublane-aligned
        u_t = u_ref[pl.ds(row, batch_p), :]
        return u_t + jnp.dot(h, whT, preferred_element_type=jnp.float32)

    h = lax.fori_loop(0, seq, step,
                      jnp.zeros((batch_p, hidden), jnp.float32),
                      unroll=True)

    hid_ref[...] = h

    # Phase 3: h2o head as VPU multiply + lane reduction (N=1 matmul would
    # waste a full MXU pass); bias read as an SMEM scalar.
    logits = jnp.sum(h * wo_ref[...], axis=-1, keepdims=True) + bo_ref[0, 0]
    out_ref[...] = jax.nn.sigmoid(logits)


def rnn_forward(x_bsf, wx, wh, bh, wo, bo):
    """x_bsf: (batch, seq, input_size) -- same layout PyTorch forward receives."""
    batch, seq, in_size = x_bsf.shape
    hidden = wh.shape[0]
    batch_p = max(8, ((batch + 7) // 8) * 8)             # pad batch to sublanes

    # Time-major, pad batch with zeros, fold (seq, batch_p) into rows.
    x_sbf = jnp.transpose(x_bsf, (1, 0, 2)).astype(jnp.float32)
    x_pad = jnp.pad(x_sbf, ((0, 0), (0, batch_p - batch), (0, 0)))
    x2d = x_pad.reshape(seq * batch_p, in_size)

    wxT = jnp.transpose(wx)                              # (in, hidden)
    whT = jnp.transpose(wh)                              # (hidden, hidden)
    bh2 = bh.reshape(1, hidden)
    wo2 = wo.reshape(1, hidden)
    bo2 = bo.reshape(1, 1)

    vmem = lambda: pl.BlockSpec(memory_space=pltpu.MemorySpace.VMEM)
    smem = lambda: pl.BlockSpec(memory_space=pltpu.MemorySpace.SMEM)

    out_p, hid_p = pl.pallas_call(
        rnn_kernel,
        out_shape=(jax.ShapeDtypeStruct((batch_p, 1), jnp.float32),
                   jax.ShapeDtypeStruct((batch_p, hidden), jnp.float32)),
        in_specs=[vmem(),   # x2d
                  vmem(),   # WxT
                  vmem(),   # WhT
                  vmem(),   # b_i2h
                  vmem(),   # W_h2o row
                  smem()],  # b_h2o scalar
        out_specs=(vmem(), vmem()),
        scratch_shapes=[pltpu.VMEM((seq * batch_p, hidden), jnp.float32)],
    )(x2d, wxT, whT, bh2, wo2, bo2)

    return out_p[:batch], hid_p[:batch]


def init_params(key, input_size, hidden_size):
    """Deterministic init mimicking nn.Linear default (uniform +/- 1/sqrt(fan_in))."""
    k1, k2, k3, k4 = jax.random.split(key, 4)
    fan_in_i2h = input_size + hidden_size
    bnd1 = 1.0 / jnp.sqrt(fan_in_i2h)
    w_i2h = jax.random.uniform(k1, (hidden_size, fan_in_i2h), jnp.float32,
                               minval=-bnd1, maxval=bnd1)
    b_i2h = jax.random.uniform(k2, (hidden_size,), jnp.float32,
                               minval=-bnd1, maxval=bnd1)
    bnd2 = 1.0 / jnp.sqrt(hidden_size)
    w_h2o = jax.random.uniform(k3, (1, hidden_size), jnp.float32,
                               minval=-bnd2, maxval=bnd2)
    b_h2o = jax.random.uniform(k4, (1,), jnp.float32,
                               minval=-bnd2, maxval=bnd2)
    # split i2h weight into input part and hidden part (concat order: [x, h])
    wx = w_i2h[:, :input_size]
    wh = w_i2h[:, input_size:]
    return wx, wh, b_i2h, w_h2o, b_h2o


def rnn_reference(x_bsf, wx, wh, bh, wo, bo):
    """Pure-JAX reference matching the PyTorch loop."""
    batch = x_bsf.shape[0]
    hidden = jnp.zeros((batch, wh.shape[0]), jnp.float32)
    x_sbf = jnp.transpose(x_bsf, (1, 0, 2))
    for t in range(x_sbf.shape[0]):
        hidden = x_sbf[t] @ wx.T + hidden @ wh.T + bh
    out = jax.nn.sigmoid(hidden @ wo.T + bo)
    return out, hidden


if __name__ == "__main__":
    batch, seq, input_size, hidden_size = 2, 8, 16, 32

    key = jax.random.PRNGKey(0)
    kx, kp = jax.random.split(key)
    x = jax.random.normal(kx, (batch, seq, input_size), jnp.float32)
    wx, wh, bh, wo, bo = init_params(kp, input_size, hidden_size)

    out, hid = rnn_forward(x, wx, wh, bh, wo, bo)
    out = jax.block_until_ready(out)
    hid = jax.block_until_ready(hid)

    out_exp, hid_exp = rnn_reference(x, wx, wh, bh, wo, bo)
    assert out.shape == (batch, 1) and hid.shape == (batch, hidden_size)
    assert jnp.allclose(out, out_exp, atol=1e-5), "output mismatch"
    assert jnp.allclose(hid, hid_exp, atol=1e-4), "hidden mismatch"

    print("KERNEL_OK")
</pallas_src>

<mosaic_0001>
module attributes {stable_mosaic.version = 11 : i64} {
  func.func @rnn_kernel(%arg0: memref<64x16xf32, #tpu.memory_space<vmem>>, %arg1: memref<16x32xf32, #tpu.memory_space<vmem>>, %arg2: memref<32x32xf32, #tpu.memory_space<vmem>>, %arg3: memref<1x32xf32, #tpu.memory_space<vmem>>, %arg4: memref<1x32xf32, #tpu.memory_space<vmem>>, %arg5: memref<1x1xf32, #tpu.memory_space<smem>>, %arg6: memref<8x1xf32, #tpu.memory_space<vmem>>, %arg7: memref<8x32xf32, #tpu.memory_space<vmem>>, %arg8: memref<64x32xf32, #tpu.memory_space<vmem>>) attributes {dimension_semantics = [], scalar_prefetch = 0 : i64, scratch_operands = 1 : i64, tpu.core_type = #tpu.core_type<tc>} {
    %c0 = arith.constant 0 : index
    %c0_0 = arith.constant 0 : index
    %0 = vector.load %arg0[%c0, %c0_0] : memref<64x16xf32, #tpu.memory_space<vmem>>, vector<64x16xf32>
    %c0_1 = arith.constant 0 : index
    %c0_2 = arith.constant 0 : index
    %1 = vector.load %arg1[%c0_1, %c0_2] : memref<16x32xf32, #tpu.memory_space<vmem>>, vector<16x32xf32>
    %cst = arith.constant dense<0.000000e+00> : vector<64x32xf32>
    %2 = tpu.matmul %0, %1, %cst {dimension_numbers = #tpu.dot_dimension_numbers<[1], [0], [0], [1], [0, 0, 1, 1], [], []>} : vector<64x16xf32>, vector<16x32xf32>, vector<64x32xf32> -> vector<64x32xf32>
    %c0_3 = arith.constant 0 : index
    %c0_4 = arith.constant 0 : index
    %3 = vector.load %arg3[%c0_3, %c0_4] : memref<1x32xf32, #tpu.memory_space<vmem>>, vector<1x32xf32>
    %4 = vector.broadcast %3 : vector<1x32xf32> to vector<64x32xf32>
    %5 = arith.addf %2, %4 : vector<64x32xf32>
    %c0_5 = arith.constant 0 : index
    %c0_6 = arith.constant 0 : index
    %6 = vector.load %arg8[%c0_5, %c0_6] : memref<64x32xf32, #tpu.memory_space<vmem>>, vector<64x32xf32>
    tpu.vector_store %arg8[%c0_5, %c0_6], %5 {strides = array<i32>} : memref<64x32xf32, #tpu.memory_space<vmem>>, vector<64x32xf32>,
    %c0_7 = arith.constant 0 : index
    %c0_8 = arith.constant 0 : index
    %7 = vector.load %arg2[%c0_7, %c0_8] : memref<32x32xf32, #tpu.memory_space<vmem>>, vector<32x32xf32>
    %cst_9 = arith.constant 0.000000e+00 : f32
    %8 = vector.broadcast %cst_9 : f32 to vector<8x32xf32>
    %c0_i32 = arith.constant 0 : i32
    %c8_i32 = arith.constant 8 : i32
    %9 = arith.muli %c0_i32, %c8_i32 : i32
    %10 = tpu.assume_multiple %9, 8 : i32
    %11 = arith.index_cast %10 : i32 to index
    %c0_10 = arith.constant 0 : index
    %12 = vector.load %arg8[%11, %c0_10] : memref<64x32xf32, #tpu.memory_space<vmem>>, vector<8x32xf32>
    %cst_11 = arith.constant dense<0.000000e+00> : vector<8x32xf32>
    %13 = tpu.matmul %8, %7, %cst_11 {dimension_numbers = #tpu.dot_dimension_numbers<[1], [0], [0], [1], [0, 0, 1, 1], [], []>} : vector<8x32xf32>, vector<32x32xf32>, vector<8x32xf32> -> vector<8x32xf32>
    %14 = arith.addf %12, %13 : vector<8x32xf32>
    %c1_i32 = arith.constant 1 : i32
    %c8_i32_12 = arith.constant 8 : i32
    %15 = arith.muli %c1_i32, %c8_i32_12 : i32
    %16 = tpu.assume_multiple %15, 8 : i32
    %17 = arith.index_cast %16 : i32 to index
    %c0_13 = arith.constant 0 : index
    %18 = vector.load %arg8[%17, %c0_13] : memref<64x32xf32, #tpu.memory_space<vmem>>, vector<8x32xf32>
    %cst_14 = arith.constant dense<0.000000e+00> : vector<8x32xf32>
    %19 = tpu.matmul %14, %7, %cst_14 {dimension_numbers = #tpu.dot_dimension_numbers<[1], [0], [0], [1], [0, 0, 1, 1], [], []>} : vector<8x32xf32>, vector<32x32xf32>, vector<8x32xf32> -> vector<8x32xf32>
    %20 = arith.addf %18, %19 : vector<8x32xf32>
    %c2_i32 = arith.constant 2 : i32
    %c8_i32_15 = arith.constant 8 : i32
    %21 = arith.muli %c2_i32, %c8_i32_15 : i32
    %22 = tpu.assume_multiple %21, 8 : i32
    %23 = arith.index_cast %22 : i32 to index
    %c0_16 = arith.constant 0 : index
    %24 = vector.load %arg8[%23, %c0_16] : memref<64x32xf32, #tpu.memory_space<vmem>>, vector<8x32xf32>
    %cst_17 = arith.constant dense<0.000000e+00> : vector<8x32xf32>
    %25 = tpu.matmul %20, %7, %cst_17 {dimension_numbers = #tpu.dot_dimension_numbers<[1], [0], [0], [1], [0, 0, 1, 1], [], []>} : vector<8x32xf32>, vector<32x32xf32>, vector<8x32xf32> -> vector<8x32xf32>
    %26 = arith.addf %24, %25 : vector<8x32xf32>
    %c3_i32 = arith.constant 3 : i32
    %c8_i32_18 = arith.constant 8 : i32
    %27 = arith.muli %c3_i32, %c8_i32_18 : i32
    %28 = tpu.assume_multiple %27, 8 : i32
    %29 = arith.index_cast %28 : i32 to index
    %c0_19 = arith.constant 0 : index
    %30 = vector.load %arg8[%29, %c0_19] : memref<64x32xf32, #tpu.memory_space<vmem>>, vector<8x32xf32>
    %cst_20 = arith.constant dense<0.000000e+00> : vector<8x32xf32>
    %31 = tpu.matmul %26, %7, %cst_20 {dimension_numbers = #tpu.dot_dimension_numbers<[1], [0], [0], [1], [0, 0, 1, 1], [], []>} : vector<8x32xf32>, vector<32x32xf32>, vector<8x32xf32> -> vector<8x32xf32>
    %32 = arith.addf %30, %31 : vector<8x32xf32>
    %c4_i32 = arith.constant 4 : i32
    %c8_i32_21 = arith.constant 8 : i32
    %33 = arith.muli %c4_i32, %c8_i32_21 : i32
    %34 = tpu.assume_multiple %33, 8 : i32
    %35 = arith.index_cast %34 : i32 to index
    %c0_22 = arith.constant 0 : index
    %36 = vector.load %arg8[%35, %c0_22] : memref<64x32xf32, #tpu.memory_space<vmem>>, vector<8x32xf32>
    %cst_23 = arith.constant dense<0.000000e+00> : vector<8x32xf32>
    %37 = tpu.matmul %32, %7, %cst_23 {dimension_numbers = #tpu.dot_dimension_numbers<[1], [0], [0], [1], [0, 0, 1, 1], [], []>} : vector<8x32xf32>, vector<32x32xf32>, vector<8x32xf32> -> vector<8x32xf32>
    %38 = arith.addf %36, %37 : vector<8x32xf32>
    %c5_i32 = arith.constant 5 : i32
    %c8_i32_24 = arith.constant 8 : i32
    %39 = arith.muli %c5_i32, %c8_i32_24 : i32
    %40 = tpu.assume_multiple %39, 8 : i32
    %41 = arith.index_cast %40 : i32 to index
    %c0_25 = arith.constant 0 : index
    %42 = vector.load %arg8[%41, %c0_25] : memref<64x32xf32, #tpu.memory_space<vmem>>, vector<8x32xf32>
    %cst_26 = arith.constant dense<0.000000e+00> : vector<8x32xf32>
    %43 = tpu.matmul %38, %7, %cst_26 {dimension_numbers = #tpu.dot_dimension_numbers<[1], [0], [0], [1], [0, 0, 1, 1], [], []>} : vector<8x32xf32>, vector<32x32xf32>, vector<8x32xf32> -> vector<8x32xf32>
    %44 = arith.addf %42, %43 : vector<8x32xf32>
    %c6_i32 = arith.constant 6 : i32
    %c8_i32_27 = arith.constant 8 : i32
    %45 = arith.muli %c6_i32, %c8_i32_27 : i32
    %46 = tpu.assume_multiple %45, 8 : i32
    %47 = arith.index_cast %46 : i32 to index
    %c0_28 = arith.constant 0 : index
    %48 = vector.load %arg8[%47, %c0_28] : memref<64x32xf32, #tpu.memory_space<vmem>>, vector<8x32xf32>
    %cst_29 = arith.constant dense<0.000000e+00> : vector<8x32xf32>
    %49 = tpu.matmul %44, %7, %cst_29 {dimension_numbers = #tpu.dot_dimension_numbers<[1], [0], [0], [1], [0, 0, 1, 1], [], []>} : vector<8x32xf32>, vector<32x32xf32>, vector<8x32xf32> -> vector<8x32xf32>
    %50 = arith.addf %48, %49 : vector<8x32xf32>
    %c7_i32 = arith.constant 7 : i32
    %c8_i32_30 = arith.constant 8 : i32
    %51 = arith.muli %c7_i32, %c8_i32_30 : i32
    %52 = tpu.assume_multiple %51, 8 : i32
    %53 = arith.index_cast %52 : i32 to index
    %c0_31 = arith.constant 0 : index
    %54 = vector.load %arg8[%53, %c0_31] : memref<64x32xf32, #tpu.memory_space<vmem>>, vector<8x32xf32>
    %cst_32 = arith.constant dense<0.000000e+00> : vector<8x32xf32>
    %55 = tpu.matmul %50, %7, %cst_32 {dimension_numbers = #tpu.dot_dimension_numbers<[1], [0], [0], [1], [0, 0, 1, 1], [], []>} : vector<8x32xf32>, vector<32x32xf32>, vector<8x32xf32> -> vector<8x32xf32>
    %56 = arith.addf %54, %55 : vector<8x32xf32>
    %c8_i32_33 = arith.constant 8 : i32
    %c0_34 = arith.constant 0 : index
    %c0_35 = arith.constant 0 : index
    %57 = vector.load %arg7[%c0_34, %c0_35] : memref<8x32xf32, #tpu.memory_space<vmem>>, vector<8x32xf32>
    tpu.vector_store %arg7[%c0_34, %c0_35], %56 {strides = array<i32>} : memref<8x32xf32, #tpu.memory_space<vmem>>, vector<8x32xf32>,
    %c0_36 = arith.constant 0 : index
    %c0_37 = arith.constant 0 : index
    %58 = vector.load %arg4[%c0_36, %c0_37] : memref<1x32xf32, #tpu.memory_space<vmem>>, vector<1x32xf32>
    %59 = vector.broadcast %58 : vector<1x32xf32> to vector<8x32xf32>
    %60 = arith.mulf %56, %59 : vector<8x32xf32>
    %cst_38 = arith.constant dense<0.000000e+00> : vector<8xf32>
    %61 = vector.multi_reduction <add>, %60, %cst_38 [1] : vector<8x32xf32> to vector<8xf32>
    %62 = vector.shape_cast %61 : vector<8xf32> to vector<8x1xf32>
    %c0_39 = arith.constant 0 : index
    %c0_40 = arith.constant 0 : index
    %63 = memref.load %arg5[%c0_39, %c0_40] : memref<1x1xf32, #tpu.memory_space<smem>>
    %64 = vector.broadcast %63 : f32 to vector<8x1xf32>
    %65 = arith.addf %62, %64 : vector<8x1xf32>
    %66 = arith.negf %65 : vector<8x1xf32>
    %67 = math.exp %66 : vector<8x1xf32>
    %cst_41 = arith.constant 1.000000e+00 : f32
    %68 = vector.broadcast %cst_41 : f32 to vector<8x1xf32>
    %69 = arith.addf %68, %67 : vector<8x1xf32>
    %70 = arith.divf %68, %69 : vector<8x1xf32>
    %c0_42 = arith.constant 0 : index
    %c0_43 = arith.constant 0 : index
    %71 = vector.load %arg6[%c0_42, %c0_43] : memref<8x1xf32, #tpu.memory_space<vmem>>, vector<8x1xf32>
    tpu.vector_store %arg6[%c0_42, %c0_43], %70 {strides = array<i32>} : memref<8x1xf32, #tpu.memory_space<vmem>>, vector<8x1xf32>,
    return
  }
}

</mosaic_0001>

<llo_original>
// kernel: tpu_custom_call.1
$region0: #{tpu_custom_call.1}
  #allocation0 [shape = 'u32[]', space=smem, size = 0x4, offset = 0x4, fixed_abs, tag = 'smem constant byte address 0x4 - core index']
  #allocation1 [shape = 'u32[144,128]{1,0:T(1,128)}', space=vmem, size = 0x12000, scoped, tag = 'internal scratch']
  #allocation2 [shape = 'f32[64,32]{1,0:T(8,128)}', space=vmem, size = 0x8000, scoped, tag = 'scratch operand']
  #allocation3 [shape = 'f32[1,1]{1,0:T(1,128)S(6)}', space=smem, size = 0x200, scoped, tag = 'scoped memory for tpu_custom_call.1']
  %s0 = inlined_call_operand.vmem [shape: f32[64,16], index: 0, kind: input, shape index: {}]
  %s1 = inlined_call_operand.vmem [shape: f32[16,32], index: 1, kind: input, shape index: {}]
  %s2 = inlined_call_operand.vmem [shape: f32[32,32], index: 2, kind: input, shape index: {}]
  %s3 = inlined_call_operand.vmem [shape: f32[1,32], index: 3, kind: input, shape index: {}]
  %s4 = inlined_call_operand.vmem [shape: f32[1,32], index: 4, kind: input, shape index: {}]
  %s5 = inlined_call_operand.<no memory space> [shape: f32[1,1], index: 5, kind: input, shape index: {}]
  %s6 = inlined_call_operand.vmem [shape: f32[8,1], index: 6, kind: output, shape index: {0}]
  %s7 = inlined_call_operand.hbm [shape: f32[8,32], index: 7, kind: output, shape index: {1}]
  %8 = xla_tuple %s6, %s7
  %s9 = sld [smem:[#allocation0]]
  $region42: #{tpu_custom_call.1} parent=0
    _
  %s11 = ssub.s32 1, %s9
  %s12 = scalar_select 0, %s11, %s9
  %13 = sst [smem:[#allocation3]] %s5
  $region1: #{tpu_custom_call.1} parent=0
    #allocation4 [shape = 'u8[4096]{0}', space=vmem, size = 0x1000, scoped, tag = 'output window, operand 1, single buffered']
    #allocation5 [shape = 's32[1]{0}', space=sflag, size = 0x4, scoped, tag = 'scoped memory for tpu_custom_call.1']
    %14 = vsyncpa [#allocation5], 0
    // Predicated region
    $region2: #{tpu_custom_call.1} parent=1 // pred_check
      _
    $region3: #{tpu_custom_call.1} parent=1 // pred_check_branch
      %16 = sbr.rel (0) target = $region5
    $region4: #{tpu_custom_call.1} parent=1 // pred_region
      _
    $region5: #{tpu_custom_call.1} parent=1 // pred_fallthru
      _
    // Predicated region
    $region6: #{tpu_custom_call.1} parent=1 // pred_check
      _
    $region7: #{tpu_custom_call.1} parent=1 // pred_check_branch
      %18 = sbr.rel (0) target = $region9
    $region8: #{tpu_custom_call.1} parent=1 // pred_region
      _
    $region9: #{tpu_custom_call.1} parent=1 // pred_fallthru
      _
    // Predicated region
    $region10: #{tpu_custom_call.1} parent=1 // pred_check
      _
    $region11: #{tpu_custom_call.1} parent=1 // pred_check_branch
      %20 = sbr.rel (0) target = $region13
    $region12: #{tpu_custom_call.1} parent=1 // pred_region
      _
    $region13: #{tpu_custom_call.1} parent=1 // pred_fallthru
      _
    // Predicated region
    $region14: #{tpu_custom_call.1} parent=1 // pred_check
      _
    $region15: #{tpu_custom_call.1} parent=1 // pred_check_branch
      %22 = sbr.rel (0) target = $region17
    $region16: #{tpu_custom_call.1} parent=1 // pred_region
      _
    $region17: #{tpu_custom_call.1} parent=1 // pred_fallthru
      _
    // Predicated region
    $region18: #{tpu_custom_call.1} parent=1 // pred_check
      _
    $region19: #{tpu_custom_call.1} parent=1 // pred_check_branch
      %24 = sbr.rel (0) target = $region21
    $region20: #{tpu_custom_call.1} parent=1 // pred_region
      _
    $region21: #{tpu_custom_call.1} parent=1 // pred_fallthru
      _
    // Predicated region
    $region22: #{tpu_custom_call.1} parent=1 // pred_check
      _
    $region23: #{tpu_custom_call.1} parent=1 // pred_check_branch
      %26 = sbr.rel (0) target = $region25
    $region24: #{tpu_custom_call.1} parent=1 // pred_region
      _
    $region25: #{tpu_custom_call.1} parent=1 // pred_fallthru
      _
    %v27 = vld [vmem:[%s0] sm:$0xff]
    %v28 = vld [vmem:[%s0 + $0x8] sm:$0xff]
    %v29 = vld [vmem:[%s0 + $0x10] sm:$0xff]
    %v30 = vld [vmem:[%s0 + $0x18] sm:$0xff]
    %v31 = vld [vmem:[%s0 + $0x20] sm:$0xff]
    %v32 = vld [vmem:[%s0 + $0x28] sm:$0xff]
    %v33 = vld [vmem:[%s0 + $0x30] sm:$0xff]
    %v34 = vld [vmem:[%s0 + $0x38] sm:$0xff]
    %v35 = vld [vmem:[%s1] sm:$0xff]
    %v36 = vld [vmem:[%s1 + $0x8] sm:$0xff]
    %v37 = vld [vmem:[%s3] sm:$0x1]
    %v39 = vlaneseq
    %v40 = vshrl.u32 %v39, 7
    %v41 = vsub.s32 0, %v40
    %v42 = vrot.slane %v37, %v41
    %vm44 = vcmask 130048
    %v46 = vsel %vm44, %v27, 0
    %v49 = vsel %vm44, %v28, 0
    %v52 = vsel %vm44, %v29, 0
    %v55 = vsel %vm44, %v30, 0
    %v58 = vsel %vm44, %v31, 0
    %v61 = vsel %vm44, %v32, 0
    %v64 = vsel %vm44, %v33, 0
    %v67 = vsel %vm44, %v34, 0
    %69 = vmatprep.subr.mxu0 0.0
    %70 = vmatpush1.msra.mxu0 %v35
    %71 = vmatprep.subr.mxu0 0.0
    %72 = vmatpush1.msra.mxu0 %v36
    %73 = vmatprep.subr.mxu0 0.0
    %74 = vmatpush1.msra.mxu0 0.0
    %75 = vmatprep.subr.mxu0 0.0
    %76 = vmatpush1.msra.mxu0 0.0
    %77 = vmatprep.subr.mxu0 0.0
    %78 = vmatpush1.msra.mxu0 0.0
    %79 = vmatprep.subr.mxu0 0.0
    %80 = vmatpush1.msra.mxu0 0.0
    %81 = vmatprep.subr.mxu0 0.0
    %82 = vmatpush1.msra.mxu0 0.0
    %83 = vmatprep.subr.mxu0 0.0
    %84 = vmatpush1.msra.mxu0 0.0
    %85 = vmatprep.subr.mxu0 0.0
    %86 = vmatpush1.msra.mxu0 0.0
    %87 = vmatprep.subr.mxu0 0.0
    %88 = vmatpush1.msra.mxu0 0.0
    %89 = vmatprep.subr.mxu0 0.0
    %90 = vmatpush1.msra.mxu0 0.0
    %91 = vmatprep.subr.mxu0 0.0
    %92 = vmatpush1.msra.mxu0 0.0
    %93 = vmatprep.subr.mxu0 0.0
    %94 = vmatpush1.msra.mxu0 0.0
    %95 = vmatprep.subr.mxu0 0.0
    %96 = vmatpush1.msra.mxu0 0.0
    %97 = vmatprep.subr.mxu0 0.0
    %98 = vmatpush1.msra.mxu0 0.0
    %99 = vmatprep.subr.mxu0 0.0
    %100 = vmatpush1.msra.mxu0 0.0
    %101 = vmatprep.subr.mxu0 0.0
    %102 = vmatpush1.msra.mxu0 0.0
    %103 = vmatprep.subr.mxu0 0.0
    %104 = vmatpush1.msra.mxu0 0.0
    %105 = vmatprep.subr.mxu0 0.0
    %106 = vmatpush1.msra.mxu0 0.0
    %107 = vmatprep.subr.mxu0 0.0
    %108 = vmatpush1.msra.mxu0 0.0
    %109 = vmatprep.subr.mxu0 0.0
    %110 = vmatpush1.msra.mxu0 0.0
    %111 = vmatprep.subr.mxu0 0.0
    %112 = vmatpush1.msra.mxu0 0.0
    %113 = vmatprep.subr.mxu0 0.0
    %114 = vmatpush1.msra.mxu0 0.0
    %115 = vmatprep.subr.mxu0 0.0
    %116 = vmatpush1.msra.mxu0 0.0
    %117 = vmatprep.subr.mxu0 0.0
    %118 = vmatpush1.msra.mxu0 0.0
    %119 = vmatprep.subr.mxu0 0.0
    %120 = vmatpush1.msra.mxu0 0.0
    %121 = vmatprep.subr.mxu0 0.0
    %122 = vmatpush1.msra.mxu0 0.0
    %123 = vmatprep.subr.mxu0 0.0
    %124 = vmatpush1.msra.mxu0 0.0
    %125 = vmatprep.subr.mxu0 0.0
    %126 = vmatpush1.msra.mxu0 0.0
    %127 = vmatprep.subr.mxu0 0.0
    %128 = vmatpush1.msra.mxu0 0.0
    %129 = vmatprep.subr.mxu0 0.0
    %130 = vmatpush1.msra.mxu0 0.0
    %131 = vmatprep.subr.mxu0 0.0
    %132 = vmatpush1.msra.mxu0 0.0
    %133 = vmatprep.mubr.f32.mxu0 0.0
    %134 = vmatmul.mubr.f32.gmra.mrb[0].mxu0 %v46
    %v135 = vpop.f32.mrb[0].mxu0
    %v136 = vadd.f32 %v42, %v135
    %v137 = vpop.f32.mrb[0].mxu0
    %138 = vmatprep.mubr.f32.mxu0 0.0
    %139 = vmatmul.mubr.f32.gmra.mrb[0].mxu0 %v49
    %v140 = vpop.f32.mrb[0].mxu0
    %v141 = vadd.f32 %v42, %v140
    %v142 = vpop.f32.mrb[0].mxu0
    %143 = vmatprep.mubr.f32.mxu0 0.0
    %144 = vmatmul.mubr.f32.gmra.mrb[0].mxu0 %v52
    %v145 = vpop.f32.mrb[0].mxu0
    %v146 = vadd.f32 %v42, %v145
    %v147 = vpop.f32.mrb[0].mxu0
    %148 = vmatprep.mubr.f32.mxu0 0.0
    %149 = vmatmul.mubr.f32.gmra.mrb[0].mxu0 %v55
    %v150 = vpop.f32.mrb[0].mxu0
    %v151 = vadd.f32 %v42, %v150
    %v152 = vpop.f32.mrb[0].mxu0
    %153 = vmatprep.mubr.f32.mxu0 0.0
    %154 = vmatmul.mubr.f32.gmra.mrb[0].mxu0 %v58
    %v155 = vpop.f32.mrb[0].mxu0
    %v156 = vadd.f32 %v42, %v155
    %v157 = vpop.f32.mrb[0].mxu0
    %158 = vmatprep.mubr.f32.mxu0 0.0
    %159 = vmatmul.mubr.f32.gmra.mrb[0].mxu0 %v61
    %v160 = vpop.f32.mrb[0].mxu0
    %v161 = vadd.f32 %v42, %v160
    %v162 = vpop.f32.mrb[0].mxu0
    %163 = vmatprep.mubr.f32.mxu0 0.0
    %164 = vmatmul.mubr.f32.gmra.mrb[0].mxu0 %v64
    %v165 = vpop.f32.mrb[0].mxu0
    %v166 = vadd.f32 %v42, %v165
    %v167 = vpop.f32.mrb[0].mxu0
    %168 = vmatprep.mubr.f32.mxu0 0.0
    %169 = vmatmul.mubr.f32.gmra.mrb[0].mxu0 %v67
    %v170 = vpop.f32.mrb[0].mxu0
    %v171 = vadd.f32 %v42, %v170
    %v172 = vpop.f32.mrb[0].mxu0
    %173 = vdwg.mxu0
    %vm174 = vcmask 261120
    %175 = vst.msk [vmem:[#allocation2] sm:$0xff] %vm174, %v136
    %176 = vst.msk [vmem:[#allocation2 + $0x8] sm:$0xff] %vm174, %v141
    %177 = vst.msk [vmem:[#allocation2 + $0x10] sm:$0xff] %vm174, %v146
    %178 = vst.msk [vmem:[#allocation2 + $0x18] sm:$0xff] %vm174, %v151
    %179 = vst.msk [vmem:[#allocation2 + $0x20] sm:$0xff] %vm174, %v156
    %180 = vst.msk [vmem:[#allocation2 + $0x28] sm:$0xff] %vm174, %v161
    %181 = vst.msk [vmem:[#allocation2 + $0x30] sm:$0xff] %vm174, %v166
    %182 = vst.msk [vmem:[#allocation2 + $0x38] sm:$0xff] %vm174, %v171
    %v183 = vld [vmem:[%s2] sm:$0xff]
    %v184 = vld [vmem:[%s2 + $0x8] sm:$0xff]
    %v185 = vld [vmem:[%s2 + $0x10] sm:$0xff]
    %v186 = vld [vmem:[%s2 + $0x18] sm:$0xff]
    %v187 = vld [vmem:[#allocation2] sm:$0xff]
    %v189 = vsel %vm174, 0.0, 0
    %191 = vmatprep.subr.mxu0 0.0
    %192 = vmatpush1.msra.mxu0 %v183
    %193 = vmatprep.subr.mxu0 0.0
    %194 = vmatpush1.msra.mxu0 %v184
    %195 = vmatprep.subr.mxu0 0.0
    %196 = vmatpush1.msra.mxu0 %v185
    %197 = vmatprep.subr.mxu0 0.0
    %198 = vmatpush1.msra.mxu0 %v186
    %199 = vmatprep.subr.mxu0 0.0
    %200 = vmatpush1.msra.mxu0 0.0
    %201 = vmatprep.subr.mxu0 0.0
    %202 = vmatpush1.msra.mxu0 0.0
    %203 = vmatprep.subr.mxu0 0.0
    %204 = vmatpush1.msra.mxu0 0.0
    %205 = vmatprep.subr.mxu0 0.0
    %206 = vmatpush1.msra.mxu0 0.0
    %207 = vmatprep.subr.mxu0 0.0
    %208 = vmatpush1.msra.mxu0 0.0
    %209 = vmatprep.subr.mxu0 0.0
    %210 = vmatpush1.msra.mxu0 0.0
    %211 = vmatprep.subr.mxu0 0.0
    %212 = vmatpush1.msra.mxu0 0.0
    %213 = vmatprep.subr.mxu0 0.0
    %214 = vmatpush1.msra.mxu0 0.0
    %215 = vmatprep.subr.mxu0 0.0
    %216 = vmatpush1.msra.mxu0 0.0
    %217 = vmatprep.subr.mxu0 0.0
    %218 = vmatpush1.msra.mxu0 0.0
    %219 = vmatprep.subr.mxu0 0.0
    %220 = vmatpush1.msra.mxu0 0.0
    %221 = vmatprep.subr.mxu0 0.0
    %222 = vmatpush1.msra.mxu0 0.0
    %223 = vmatprep.subr.mxu0 0.0
    %224 = vmatpush1.msra.mxu0 0.0
    %225 = vmatprep.subr.mxu0 0.0
    %226 = vmatpush1.msra.mxu0 0.0
    %227 = vmatprep.subr.mxu0 0.0
    %228 = vmatpush1.msra.mxu0 0.0
    %229 = vmatprep.subr.mxu0 0.0
    %230 = vmatpush1.msra.mxu0 0.0
    %231 = vmatprep.subr.mxu0 0.0
    %232 = vmatpush1.msra.mxu0 0.0
    %233 = vmatprep.subr.mxu0 0.0
    %234 = vmatpush1.msra.mxu0 0.0
    %235 = vmatprep.subr.mxu0 0.0
    %236 = vmatpush1.msra.mxu0 0.0
    %237 = vmatprep.subr.mxu0 0.0
    %238 = vmatpush1.msra.mxu0 0.0
    %239 = vmatprep.subr.mxu0 0.0
    %240 = vmatpush1.msra.mxu0 0.0
    %241 = vmatprep.subr.mxu0 0.0
    %242 = vmatpush1.msra.mxu0 0.0
    %243 = vmatprep.subr.mxu0 0.0
    %244 = vmatpush1.msra.mxu0 0.0
    %245 = vmatprep.subr.mxu0 0.0
    %246 = vmatpush1.msra.mxu0 0.0
    %247 = vmatprep.subr.mxu0 0.0
    %248 = vmatpush1.msra.mxu0 0.0
    %249 = vmatprep.subr.mxu0 0.0
    %250 = vmatpush1.msra.mxu0 0.0
    %251 = vmatprep.subr.mxu0 0.0
    %252 = vmatpush1.msra.mxu0 0.0
    %253 = vmatprep.subr.mxu0 0.0
    %254 = vmatpush1.msra.mxu0 0.0
    %255 = vmatprep.mubr.f32.mxu0 0.0
    %256 = vmatmul.mubr.f32.gmra.mrb[0].mxu0 %v189
    %v257 = vpop.f32.mrb[0].mxu0
    %v258 = vadd.f32 0.0, %v257
    %v259 = vpop.f32.mrb[0].mxu0
    %260 = vdwg.mxu0
    %v261 = vadd.f32 %v187, %v258
    %s262 = scalar_lea.vmem [#allocation2], 8
    %v263 = vld [vmem:[%s262] sm:$0xff]
    %v265 = vsel %vm174, %v261, 0
    %267 = vmatprep.subr.mxu0 0.0
    %268 = vmatpush1.msra.mxu0 %v183
    %269 = vmatprep.subr.mxu0 0.0
    %270 = vmatpush1.msra.mxu0 %v184
    %271 = vmatprep.subr.mxu0 0.0
    %272 = vmatpush1.msra.mxu0 %v185
    %273 = vmatprep.subr.mxu0 0.0
    %274 = vmatpush1.msra.mxu0 %v186
    %275 = vmatprep.subr.mxu0 0.0
    %276 = vmatpush1.msra.mxu0 0.0
    %277 = vmatprep.subr.mxu0 0.0
    %278 = vmatpush1.msra.mxu0 0.0
    %279 = vmatprep.subr.mxu0 0.0
    %280 = vmatpush1.msra.mxu0 0.0
    %281 = vmatprep.subr.mxu0 0.0
    %282 = vmatpush1.msra.mxu0 0.0
    %283 = vmatprep.subr.mxu0 0.0
    %284 = vmatpush1.msra.mxu0 0.0
    %285 = vmatprep.subr.mxu0 0.0
    %286 = vmatpush1.msra.mxu0 0.0
    %287 = vmatprep.subr.mxu0 0.0
    %288 = vmatpush1.msra.mxu0 0.0
    %289 = vmatprep.subr.mxu0 0.0
    %290 = vmatpush1.msra.mxu0 0.0
    %291 = vmatprep.subr.mxu0 0.0
    %292 = vmatpush1.msra.mxu0 0.0
    %293 = vmatprep.subr.mxu0 0.0
    %294 = vmatpush1.msra.mxu0 0.0
    %295 = vmatprep.subr.mxu0 0.0
    %296 = vmatpush1.msra.mxu0 0.0
    %297 = vmatprep.subr.mxu0 0.0
    %298 = vmatpush1.msra.mxu0 0.0
    %299 = vmatprep.subr.mxu0 0.0
    %300 = vmatpush1.msra.mxu0 0.0
    %301 = vmatprep.subr.mxu0 0.0
    %302 = vmatpush1.msra.mxu0 0.0
    %303 = vmatprep.subr.mxu0 0.0
    %304 = vmatpush1.msra.mxu0 0.0
    %305 = vmatprep.subr.mxu0 0.0
    %306 = vmatpush1.msra.mxu0 0.0
    %307 = vmatprep.subr.mxu0 0.0
    %308 = vmatpush1.msra.mxu0 0.0
    %309 = vmatprep.subr.mxu0 0.0
    %310 = vmatpush1.msra.mxu0 0.0
    %311 = vmatprep.subr.mxu0 0.0
    %312 = vmatpush1.msra.mxu0 0.0
    %313 = vmatprep.subr.mxu0 0.0
    %314 = vmatpush1.msra.mxu0 0.0
    %315 = vmatprep.subr.mxu0 0.0
    %316 = vmatpush1.msra.mxu0 0.0
    %317 = vmatprep.subr.mxu0 0.0
    %318 = vmatpush1.msra.mxu0 0.0
    %319 = vmatprep.subr.mxu0 0.0
    %320 = vmatpush1.msra.mxu0 0.0
    %321 = vmatprep.subr.mxu0 0.0
    %322 = vmatpush1.msra.mxu0 0.0
    %323 = vmatprep.subr.mxu0 0.0
    %324 = vmatpush1.msra.mxu0 0.0
    %325 = vmatprep.subr.mxu0 0.0
    %326 = vmatpush1.msra.mxu0 0.0
    %327 = vmatprep.subr.mxu0 0.0
    %328 = vmatpush1.msra.mxu0 0.0
    %329 = vmatprep.subr.mxu0 0.0
    %330 = vmatpush1.msra.mxu0 0.0
    %331 = vmatprep.mubr.f32.mxu0 0.0
    %332 = vmatmul.mubr.f32.gmra.mrb[0].mxu0 %v265
    %v333 = vpop.f32.mrb[0].mxu0
    %v334 = vadd.f32 0.0, %v333
    %v335 = vpop.f32.mrb[0].mxu0
    %336 = vdwg.mxu0
    %v337 = vadd.f32 %v263, %v334
    %s338 = scalar_lea.vmem [#allocation2], 16
    %v339 = vld [vmem:[%s338] sm:$0xff]
    %v341 = vsel %vm174, %v337, 0
    %343 = vmatprep.subr.mxu0 0.0
    %344 = vmatpush1.msra.mxu0 %v183
    %345 = vmatprep.subr.mxu0 0.0
    %346 = vmatpush1.msra.mxu0 %v184
    %347 = vmatprep.subr.mxu0 0.0
    %348 = vmatpush1.msra.mxu0 %v185
    %349 = vmatprep.subr.mxu0 0.0
    %350 = vmatpush1.msra.mxu0 %v186
    %351 = vmatprep.subr.mxu0 0.0
    %352 = vmatpush1.msra.mxu0 0.0
    %353 = vmatprep.subr.mxu0 0.0
    %354 = vmatpush1.msra.mxu0 0.0
    %355 = vmatprep.subr.mxu0 0.0
    %356 = vmatpush1.msra.mxu0 0.0
    %357 = vmatprep.subr.mxu0 0.0
    %358 = vmatpush1.msra.mxu0 0.0
    %359 = vmatprep.subr.mxu0 0.0
    %360 = vmatpush1.msra.mxu0 0.0
    %361 = vmatprep.subr.mxu0 0.0
    %362 = vmatpush1.msra.mxu0 0.0
    %363 = vmatprep.subr.mxu0 0.0
    %364 = vmatpush1.msra.mxu0 0.0
    %365 = vmatprep.subr.mxu0 0.0
    %366 = vmatpush1.msra.mxu0 0.0
    %367 = vmatprep.subr.mxu0 0.0
    %368 = vmatpush1.msra.mxu0 0.0
    %369 = vmatprep.subr.mxu0 0.0
    %370 = vmatpush1.msra.mxu0 0.0
    %371 = vmatprep.subr.mxu0 0.0
    %372 = vmatpush1.msra.mxu0 0.0
    %373 = vmatprep.subr.mxu0 0.0
    %374 = vmatpush1.msra.mxu0 0.0
    %375 = vmatprep.subr.mxu0 0.0
    %376 = vmatpush1.msra.mxu0 0.0
    %377 = vmatprep.subr.mxu0 0.0
    %378 = vmatpush1.msra.mxu0 0.0
    %379 = vmatprep.subr.mxu0 0.0
    %380 = vmatpush1.msra.mxu0 0.0
    %381 = vmatprep.subr.mxu0 0.0
    %382 = vmatpush1.msra.mxu0 0.0
    %383 = vmatprep.subr.mxu0 0.0
    %384 = vmatpush1.msra.mxu0 0.0
    %385 = vmatprep.subr.mxu0 0.0
    %386 = vmatpush1.msra.mxu0 0.0
    %387 = vmatprep.subr.mxu0 0.0
    %388 = vmatpush1.msra.mxu0 0.0
    %389 = vmatprep.subr.mxu0 0.0
    %390 = vmatpush1.msra.mxu0 0.0
    %391 = vmatprep.subr.mxu0 0.0
    %392 = vmatpush1.msra.mxu0 0.0
    %393 = vmatprep.subr.mxu0 0.0
    %394 = vmatpush1.msra.mxu0 0.0
    %395 = vmatprep.subr.mxu0 0.0
    %396 = vmatpush1.msra.mxu0 0.0
    %397 = vmatprep.subr.mxu0 0.0
    %398 = vmatpush1.msra.mxu0 0.0
    %399 = vmatprep.subr.mxu0 0.0
    %400 = vmatpush1.msra.mxu0 0.0
    %401 = vmatprep.subr.mxu0 0.0
    %402 = vmatpush1.msra.mxu0 0.0
    %403 = vmatprep.subr.mxu0 0.0
    %404 = vmatpush1.msra.mxu0 0.0
    %405 = vmatprep.subr.mxu0 0.0
    %406 = vmatpush1.msra.mxu0 0.0
    %407 = vmatprep.mubr.f32.mxu0 0.0
    %408 = vmatmul.mubr.f32.gmra.mrb[0].mxu0 %v341
    %v409 = vpop.f32.mrb[0].mxu0
    %v410 = vadd.f32 0.0, %v409
    %v411 = vpop.f32.mrb[0].mxu0
    %412 = vdwg.mxu0
    %v413 = vadd.f32 %v339, %v410
    %s414 = scalar_lea.vmem [#allocation2], 24
    %v415 = vld [vmem:[%s414] sm:$0xff]
    %v417 = vsel %vm174, %v413, 0
    %419 = vmatprep.subr.mxu0 0.0
    %420 = vmatpush1.msra.mxu0 %v183
    %421 = vmatprep.subr.mxu0 0.0
    %422 = vmatpush1.msra.mxu0 %v184
    %423 = vmatprep.subr.mxu0 0.0
    %424 = vmatpush1.msra.mxu0 %v185
    %425 = vmatprep.subr.mxu0 0.0
    %426 = vmatpush1.msra.mxu0 %v186
    %427 = vmatprep.subr.mxu0 0.0
    %428 = vmatpush1.msra.mxu0 0.0
    %429 = vmatprep.subr.mxu0 0.0
    %430 = vmatpush1.msra.mxu0 0.0
    %431 = vmatprep.subr.mxu0 0.0
    %432 = vmatpush1.msra.mxu0 0.0
    %433 = vmatprep.subr.mxu0 0.0
    %434 = vmatpush1.msra.mxu0 0.0
    %435 = vmatprep.subr.mxu0 0.0
    %436 = vmatpush1.msra.mxu0 0.0
    %437 = vmatprep.subr.mxu0 0.0
    %438 = vmatpush1.msra.mxu0 0.0
    %439 = vmatprep.subr.mxu0 0.0
    %440 = vmatpush1.msra.mxu0 0.0
    %441 = vmatprep.subr.mxu0 0.0
    %442 = vmatpush1.msra.mxu0 0.0
    %443 = vmatprep.subr.mxu0 0.0
    %444 = vmatpush1.msra.mxu0 0.0
    %445 = vmatprep.subr.mxu0 0.0
    %446 = vmatpush1.msra.mxu0 0.0
    %447 = vmatprep.subr.mxu0 0.0
    %448 = vmatpush1.msra.mxu0 0.0
    %449 = vmatprep.subr.mxu0 0.0
    %450 = vmatpush1.msra.mxu0 0.0
    %451 = vmatprep.subr.mxu0 0.0
    %452 = vmatpush1.msra.mxu0 0.0
    %453 = vmatprep.subr.mxu0 0.0
    %454 = vmatpush1.msra.mxu0 0.0
    %455 = vmatprep.subr.mxu0 0.0
    %456 = vmatpush1.msra.mxu0 0.0
    %457 = vmatprep.subr.mxu0 0.0
    %458 = vmatpush1.msra.mxu0 0.0
    %459 = vmatprep.subr.mxu0 0.0
    %460 = vmatpush1.msra.mxu0 0.0
    %461 = vmatprep.subr.mxu0 0.0
    %462 = vmatpush1.msra.mxu0 0.0
    %463 = vmatprep.subr.mxu0 0.0
    %464 = vmatpush1.msra.mxu0 0.0
    %465 = vmatprep.subr.mxu0 0.0
    %466 = vmatpush1.msra.mxu0 0.0
    %467 = vmatprep.subr.mxu0 0.0
    %468 = vmatpush1.msra.mxu0 0.0
    %469 = vmatprep.subr.mxu0 0.0
    %470 = vmatpush1.msra.mxu0 0.0
    %471 = vmatprep.subr.mxu0 0.0
    %472 = vmatpush1.msra.mxu0 0.0
    %473 = vmatprep.subr.mxu0 0.0
    %474 = vmatpush1.msra.mxu0 0.0
    %475 = vmatprep.subr.mxu0 0.0
    %476 = vmatpush1.msra.mxu0 0.0
    %477 = vmatprep.subr.mxu0 0.0
    %478 = vmatpush1.msra.mxu0 0.0
    %479 = vmatprep.subr.mxu0 0.0
    %480 = vmatpush1.msra.mxu0 0.0
    %481 = vmatprep.subr.mxu0 0.0
    %482 = vmatpush1.msra.mxu0 0.0
    %483 = vmatprep.mubr.f32.mxu0 0.0
    %484 = vmatmul.mubr.f32.gmra.mrb[0].mxu0 %v417
    %v485 = vpop.f32.mrb[0].mxu0
    %v486 = vadd.f32 0.0, %v485
    %v487 = vpop.f32.mrb[0].mxu0
    %488 = vdwg.mxu0
    %v489 = vadd.f32 %v415, %v486
    %s490 = scalar_lea.vmem [#allocation2], 32
    %v491 = vld [vmem:[%s490] sm:$0xff]
    %v493 = vsel %vm174, %v489, 0
    %495 = vmatprep.subr.mxu0 0.0
    %496 = vmatpush1.msra.mxu0 %v183
    %497 = vmatprep.subr.mxu0 0.0
    %498 = vmatpush1.msra.mxu0 %v184
    %499 = vmatprep.subr.mxu0 0.0
    %500 = vmatpush1.msra.mxu0 %v185
    %501 = vmatprep.subr.mxu0 0.0
    %502 = vmatpush1.msra.mxu0 %v186
    %503 = vmatprep.subr.mxu0 0.0
    %504 = vmatpush1.msra.mxu0 0.0
    %505 = vmatprep.subr.mxu0 0.0
    %506 = vmatpush1.msra.mxu0 0.0
    %507 = vmatprep.subr.mxu0 0.0
    %508 = vmatpush1.msra.mxu0 0.0
    %509 = vmatprep.subr.mxu0 0.0
    %510 = vmatpush1.msra.mxu0 0.0
    %511 = vmatprep.subr.mxu0 0.0
    %512 = vmatpush1.msra.mxu0 0.0
    %513 = vmatprep.subr.mxu0 0.0
    %514 = vmatpush1.msra.mxu0 0.0
    %515 = vmatprep.subr.mxu0 0.0
    %516 = vmatpush1.msra.mxu0 0.0
    %517 = vmatprep.subr.mxu0 0.0
    %518 = vmatpush1.msra.mxu0 0.0
    %519 = vmatprep.subr.mxu0 0.0
    %520 = vmatpush1.msra.mxu0 0.0
    %521 = vmatprep.subr.mxu0 0.0
    %522 = vmatpush1.msra.mxu0 0.0
    %523 = vmatprep.subr.mxu0 0.0
    %524 = vmatpush1.msra.mxu0 0.0
    %525 = vmatprep.subr.mxu0 0.0
    %526 = vmatpush1.msra.mxu0 0.0
    %527 = vmatprep.subr.mxu0 0.0
    %528 = vmatpush1.msra.mxu0 0.0
    %529 = vmatprep.subr.mxu0 0.0
    %530 = vmatpush1.msra.mxu0 0.0
    %531 = vmatprep.subr.mxu0 0.0
    %532 = vmatpush1.msra.mxu0 0.0
    %533 = vmatprep.subr.mxu0 0.0
    %534 = vmatpush1.msra.mxu0 0.0
    %535 = vmatprep.subr.mxu0 0.0
    %536 = vmatpush1.msra.mxu0 0.0
    %537 = vmatprep.subr.mxu0 0.0
    %538 = vmatpush1.msra.mxu0 0.0
    %539 = vmatprep.subr.mxu0 0.0
    %540 = vmatpush1.msra.mxu0 0.0
    %541 = vmatprep.subr.mxu0 0.0
    %542 = vmatpush1.msra.mxu0 0.0
    %543 = vmatprep.subr.mxu0 0.0
    %544 = vmatpush1.msra.mxu0 0.0
    %545 = vmatprep.subr.mxu0 0.0
    %546 = vmatpush1.msra.mxu0 0.0
    %547 = vmatprep.subr.mxu0 0.0
    %548 = vmatpush1.msra.mxu0 0.0
    %549 = vmatprep.subr.mxu0 0.0
    %550 = vmatpush1.msra.mxu0 0.0
    %551 = vmatprep.subr.mxu0 0.0
    %552 = vmatpush1.msra.mxu0 0.0
    %553 = vmatprep.subr.mxu0 0.0
    %554 = vmatpush1.msra.mxu0 0.0
    %555 = vmatprep.subr.mxu0 0.0
    %556 = vmatpush1.msra.mxu0 0.0
    %557 = vmatprep.subr.mxu0 0.0
    %558 = vmatpush1.msra.mxu0 0.0
    %559 = vmatprep.mubr.f32.mxu0 0.0
    %560 = vmatmul.mubr.f32.gmra.mrb[0].mxu0 %v493
    %v561 = vpop.f32.mrb[0].mxu0
    %v562 = vadd.f32 0.0, %v561
    %v563 = vpop.f32.mrb[0].mxu0
    %564 = vdwg.mxu0
    %v565 = vadd.f32 %v491, %v562
    %s566 = scalar_lea.vmem [#allocation2], 40
    %v567 = vld [vmem:[%s566] sm:$0xff]
    %v569 = vsel %vm174, %v565, 0
    %571 = vmatprep.subr.mxu0 0.0
    %572 = vmatpush1.msra.mxu0 %v183
    %573 = vmatprep.subr.mxu0 0.0
    %574 = vmatpush1.msra.mxu0 %v184
    %575 = vmatprep.subr.mxu0 0.0
    %576 = vmatpush1.msra.mxu0 %v185
    %577 = vmatprep.subr.mxu0 0.0
    %578 = vmatpush1.msra.mxu0 %v186
    %579 = vmatprep.subr.mxu0 0.0
    %580 = vmatpush1.msra.mxu0 0.0
    %581 = vmatprep.subr.mxu0 0.0
    %582 = vmatpush1.msra.mxu0 0.0
    %583 = vmatprep.subr.mxu0 0.0
    %584 = vmatpush1.msra.mxu0 0.0
    %585 = vmatprep.subr.mxu0 0.0
    %586 = vmatpush1.msra.mxu0 0.0
    %587 = vmatprep.subr.mxu0 0.0
    %588 = vmatpush1.msra.mxu0 0.0
    %589 = vmatprep.subr.mxu0 0.0
    %590 = vmatpush1.msra.mxu0 0.0
    %591 = vmatprep.subr.mxu0 0.0
    %592 = vmatpush1.msra.mxu0 0.0
    %593 = vmatprep.subr.mxu0 0.0
    %594 = vmatpush1.msra.mxu0 0.0
    %595 = vmatprep.subr.mxu0 0.0
    %596 = vmatpush1.msra.mxu0 0.0
    %597 = vmatprep.subr.mxu0 0.0
    %598 = vmatpush1.msra.mxu0 0.0
    %599 = vmatprep.subr.mxu0 0.0
    %600 = vmatpush1.msra.mxu0 0.0
    %601 = vmatprep.subr.mxu0 0.0
    %602 = vmatpush1.msra.mxu0 0.0
    %603 = vmatprep.subr.mxu0 0.0
    %604 = vmatpush1.msra.mxu0 0.0
    %605 = vmatprep.subr.mxu0 0.0
    %606 = vmatpush1.msra.mxu0 0.0
    %607 = vmatprep.subr.mxu0 0.0
    %608 = vmatpush1.msra.mxu0 0.0
    %609 = vmatprep.subr.mxu0 0.0
    %610 = vmatpush1.msra.mxu0 0.0
    %611 = vmatprep.subr.mxu0 0.0
    %612 = vmatpush1.msra.mxu0 0.0
    %613 = vmatprep.subr.mxu0 0.0
    %614 = vmatpush1.msra.mxu0 0.0
    %615 = vmatprep.subr.mxu0 0.0
    %616 = vmatpush1.msra.mxu0 0.0
    %617 = vmatprep.subr.mxu0 0.0
    %618 = vmatpush1.msra.mxu0 0.0
    %619 = vmatprep.subr.mxu0 0.0
    %620 = vmatpush1.msra.mxu0 0.0
    %621 = vmatprep.subr.mxu0 0.0
    %622 = vmatpush1.msra.mxu0 0.0
    %623 = vmatprep.subr.mxu0 0.0
    %624 = vmatpush1.msra.mxu0 0.0
    %625 = vmatprep.subr.mxu0 0.0
    %626 = vmatpush1.msra.mxu0 0.0
    %627 = vmatprep.subr.mxu0 0.0
    %628 = vmatpush1.msra.mxu0 0.0
    %629 = vmatprep.subr.mxu0 0.0
    %630 = vmatpush1.msra.mxu0 0.0
    %631 = vmatprep.subr.mxu0 0.0
    %632 = vmatpush1.msra.mxu0 0.0
    %633 = vmatprep.subr.mxu0 0.0
    %634 = vmatpush1.msra.mxu0 0.0
    %635 = vmatprep.mubr.f32.mxu0 0.0
    %636 = vmatmul.mubr.f32.gmra.mrb[0].mxu0 %v569
    %v637 = vpop.f32.mrb[0].mxu0
    %v638 = vadd.f32 0.0, %v637
    %v639 = vpop.f32.mrb[0].mxu0
    %640 = vdwg.mxu0
    %v641 = vadd.f32 %v567, %v638
    %s642 = scalar_lea.vmem [#allocation2], 48
    %v643 = vld [vmem:[%s642] sm:$0xff]
    %v645 = vsel %vm174, %v641, 0
    %647 = vmatprep.subr.mxu0 0.0
    %648 = vmatpush1.msra.mxu0 %v183
    %649 = vmatprep.subr.mxu0 0.0
    %650 = vmatpush1.msra.mxu0 %v184
    %651 = vmatprep.subr.mxu0 0.0
    %652 = vmatpush1.msra.mxu0 %v185
    %653 = vmatprep.subr.mxu0 0.0
    %654 = vmatpush1.msra.mxu0 %v186
    %655 = vmatprep.subr.mxu0 0.0
    %656 = vmatpush1.msra.mxu0 0.0
    %657 = vmatprep.subr.mxu0 0.0
    %658 = vmatpush1.msra.mxu0 0.0
    %659 = vmatprep.subr.mxu0 0.0
    %660 = vmatpush1.msra.mxu0 0.0
    %661 = vmatprep.subr.mxu0 0.0
    %662 = vmatpush1.msra.mxu0 0.0
    %663 = vmatprep.subr.mxu0 0.0
    %664 = vmatpush1.msra.mxu0 0.0
    %665 = vmatprep.subr.mxu0 0.0
    %666 = vmatpush1.msra.mxu0 0.0
    %667 = vmatprep.subr.mxu0 0.0
    %668 = vmatpush1.msra.mxu0 0.0
    %669 = vmatprep.subr.mxu0 0.0
    %670 = vmatpush1.msra.mxu0 0.0
    %671 = vmatprep.subr.mxu0 0.0
    %672 = vmatpush1.msra.mxu0 0.0
    %673 = vmatprep.subr.mxu0 0.0
    %674 = vmatpush1.msra.mxu0 0.0
    %675 = vmatprep.subr.mxu0 0.0
    %676 = vmatpush1.msra.mxu0 0.0
    %677 = vmatprep.subr.mxu0 0.0
    %678 = vmatpush1.msra.mxu0 0.0
    %679 = vmatprep.subr.mxu0 0.0
    %680 = vmatpush1.msra.mxu0 0.0
    %681 = vmatprep.subr.mxu0 0.0
    %682 = vmatpush1.msra.mxu0 0.0
    %683 = vmatprep.subr.mxu0 0.0
    %684 = vmatpush1.msra.mxu0 0.0
    %685 = vmatprep.subr.mxu0 0.0
    %686 = vmatpush1.msra.mxu0 0.0
    %687 = vmatprep.subr.mxu0 0.0
    %688 = vmatpush1.msra.mxu0 0.0
    %689 = vmatprep.subr.mxu0 0.0
    %690 = vmatpush1.msra.mxu0 0.0
    %691 = vmatprep.subr.mxu0 0.0
    %692 = vmatpush1.msra.mxu0 0.0
    %693 = vmatprep.subr.mxu0 0.0
    %694 = vmatpush1.msra.mxu0 0.0
    %695 = vmatprep.subr.mxu0 0.0
    %696 = vmatpush1.msra.mxu0 0.0
    %697 = vmatprep.subr.mxu0 0.0
    %698 = vmatpush1.msra.mxu0 0.0
    %699 = vmatprep.subr.mxu0 0.0
    %700 = vmatpush1.msra.mxu0 0.0
    %701 = vmatprep.subr.mxu0 0.0
    %702 = vmatpush1.msra.mxu0 0.0
    %703 = vmatprep.subr.mxu0 0.0
    %704 = vmatpush1.msra.mxu0 0.0
    %705 = vmatprep.subr.mxu0 0.0
    %706 = vmatpush1.msra.mxu0 0.0
    %707 = vmatprep.subr.mxu0 0.0
    %708 = vmatpush1.msra.mxu0 0.0
    %709 = vmatprep.subr.mxu0 0.0
    %710 = vmatpush1.msra.mxu0 0.0
    %711 = vmatprep.mubr.f32.mxu0 0.0
    %712 = vmatmul.mubr.f32.gmra.mrb[0].mxu0 %v645
    %v713 = vpop.f32.mrb[0].mxu0
    %v714 = vadd.f32 0.0, %v713
    %v715 = vpop.f32.mrb[0].mxu0
    %716 = vdwg.mxu0
    %v717 = vadd.f32 %v643, %v714
    %s718 = scalar_lea.vmem [#allocation2], 56
    %v719 = vld [vmem:[%s718] sm:$0xff]
    %v721 = vsel %vm174, %v717, 0
    %723 = vmatprep.subr.mxu0 0.0
    %724 = vmatpush1.msra.mxu0 %v183
    %725 = vmatprep.subr.mxu0 0.0
    %726 = vmatpush1.msra.mxu0 %v184
    %727 = vmatprep.subr.mxu0 0.0
    %728 = vmatpush1.msra.mxu0 %v185
    %729 = vmatprep.subr.mxu0 0.0
    %730 = vmatpush1.msra.mxu0 %v186
    %731 = vmatprep.subr.mxu0 0.0
    %732 = vmatpush1.msra.mxu0 0.0
    %733 = vmatprep.subr.mxu0 0.0
    %734 = vmatpush1.msra.mxu0 0.0
    %735 = vmatprep.subr.mxu0 0.0
    %736 = vmatpush1.msra.mxu0 0.0
    %737 = vmatprep.subr.mxu0 0.0
    %738 = vmatpush1.msra.mxu0 0.0
    %739 = vmatprep.subr.mxu0 0.0
    %740 = vmatpush1.msra.mxu0 0.0
    %741 = vmatprep.subr.mxu0 0.0
    %742 = vmatpush1.msra.mxu0 0.0
    %743 = vmatprep.subr.mxu0 0.0
    %744 = vmatpush1.msra.mxu0 0.0
    %745 = vmatprep.subr.mxu0 0.0
    %746 = vmatpush1.msra.mxu0 0.0
    %747 = vmatprep.subr.mxu0 0.0
    %748 = vmatpush1.msra.mxu0 0.0
    %749 = vmatprep.subr.mxu0 0.0
    %750 = vmatpush1.msra.mxu0 0.0
    %751 = vmatprep.subr.mxu0 0.0
    %752 = vmatpush1.msra.mxu0 0.0
    %753 = vmatprep.subr.mxu0 0.0
    %754 = vmatpush1.msra.mxu0 0.0
    %755 = vmatprep.subr.mxu0 0.0
    %756 = vmatpush1.msra.mxu0 0.0
    %757 = vmatprep.subr.mxu0 0.0
    %758 = vmatpush1.msra.mxu0 0.0
    %759 = vmatprep.subr.mxu0 0.0
    %760 = vmatpush1.msra.mxu0 0.0
    %761 = vmatprep.subr.mxu0 0.0
    %762 = vmatpush1.msra.mxu0 0.0
    %763 = vmatprep.subr.mxu0 0.0
    %764 = vmatpush1.msra.mxu0 0.0
    %765 = vmatprep.subr.mxu0 0.0
    %766 = vmatpush1.msra.mxu0 0.0
    %767 = vmatprep.subr.mxu0 0.0
    %768 = vmatpush1.msra.mxu0 0.0
    %769 = vmatprep.subr.mxu0 0.0
    %770 = vmatpush1.msra.mxu0 0.0
    %771 = vmatprep.subr.mxu0 0.0
    %772 = vmatpush1.msra.mxu0 0.0
    %773 = vmatprep.subr.mxu0 0.0
    %774 = vmatpush1.msra.mxu0 0.0
    %775 = vmatprep.subr.mxu0 0.0
    %776 = vmatpush1.msra.mxu0 0.0
    %777 = vmatprep.subr.mxu0 0.0
    %778 = vmatpush1.msra.mxu0 0.0
    %779 = vmatprep.subr.mxu0 0.0
    %780 = vmatpush1.msra.mxu0 0.0
    %781 = vmatprep.subr.mxu0 0.0
    %782 = vmatpush1.msra.mxu0 0.0
    %783 = vmatprep.subr.mxu0 0.0
    %784 = vmatpush1.msra.mxu0 0.0
    %785 = vmatprep.subr.mxu0 0.0
    %786 = vmatpush1.msra.mxu0 0.0
    %787 = vmatprep.mubr.f32.mxu0 0.0
    %788 = vmatmul.mubr.f32.gmra.mrb[0].mxu0 %v721
    %v789 = vpop.f32.mrb[0].mxu0
    %v790 = vadd.f32 0.0, %v789
    %v791 = vpop.f32.mrb[0].mxu0
    %792 = vdwg.mxu0
    %v793 = vadd.f32 %v719, %v790
    %794 = vst.msk [vmem:[#allocation4] sm:$0xff] %vm174, %v793
    %v795 = vld [vmem:[%s4] sm:$0x1]
    %v797 = vlaneseq
    %v798 = vshrl.u32 %v797, 7
    %v799 = vsub.s32 0, %v798
    %v800 = vrot.slane %v795, %v799
    %v802 = vmul.f32 %v793, %v800
    %v803 = vsel %vm174, %v802, 0.0
    %804 = vadd.xlane.f32.xlu0 %v803
    %v805 = vpop.xlane.xlu0 %804
    %s806 = sld [smem:[#allocation3]]
    %v807 = vstv %s806
    %v808 = vadd.f32 %v805, %v807
    %v809 = vxor.u32 %v808, 2147483648
    %v810 = vmul.f32 %v809, 1.442695
    %v811 = vpow.pop %v810
    %v812 = vadd.f32 %v811, 1.0
    %v813 = vrcp.pop %v812
    %v814 = vmul.f32 1.0, %v813
    %vm815 = vcmask 7168
    %816 = vst.msk [vmem:[%s6] sm:$0xff] %vm815, %v814
    // Predicated region
    $region26: #{tpu_custom_call.1} parent=1 // pred_check
      _
    $region27: #{tpu_custom_call.1} parent=1 // pred_check_branch
      %818 = sbr.rel (0) target = $region29
    $region28: #{tpu_custom_call.1} parent=1 // pred_region
      _
    $region29: #{tpu_custom_call.1} parent=1 // pred_fallthru
      _
    // Predicated region
    $region30: #{tpu_custom_call.1} parent=1 // pred_check
      _
    $region31: #{tpu_custom_call.1} parent=1 // pred_check_branch
      %820 = sbr.rel (0) target = $region33
    $region32: #{tpu_custom_call.1} parent=1 // pred_region
      %s822 = ssub.s32 128, 128
      %823 = vsyncadd [#allocation5], %s822
      %s825 = sshll.u32 [#allocation4], 4
      %s826 = int_to_ptr.vmem [resolvable:$true] %s825
      %828 = dma.vmem_to_hbm [thread:$0]  %s826, 128, %s7, [#allocation5]
    $region33: #{tpu_custom_call.1} parent=1 // pred_fallthru
      _
    // Predicated region
    $region34: #{tpu_custom_call.1} parent=1 // pred_check
      _
    $region35: #{tpu_custom_call.1} parent=1 // pred_check_branch
      %830 = sbr.rel (0) target = $region37
    $region36: #{tpu_custom_call.1} parent=1 // pred_region
      _
    $region37: #{tpu_custom_call.1} parent=1 // pred_fallthru
      _
    // Predicated region
    $region38: #{tpu_custom_call.1} parent=1 // pred_check
      _
    $region39: #{tpu_custom_call.1} parent=1 // pred_check_branch
      %832 = sbr.rel (0) target = $region41
    $region40: #{tpu_custom_call.1} parent=1 // pred_region
      %833 = dma.done [#allocation5], 128
    $region41: #{tpu_custom_call.1} parent=1 // pred_fallthru
      _
    %834 = vsyncpa [#allocation5], 1

</llo_original>
